<compile_context>
chip_gen: v6e
topology: v6e:2x2x1
jax: 0.10.0
libtpu: 0.0.40
codegen_flags: <defaults>
</compile_context>

<pallas_src>
import jax
import jax.numpy as jnp
from jax.experimental import pallas as pl
from jax.experimental.pallas import tpu as pltpu


_VMEM_LIMIT_BYTES = 32 * 1024 * 1024   # explicit scoped-VMEM request (safe on v5e/v6e/v7x)
_STEP_TARGET_BYTES = 12 * 1024 * 1024  # target combined (x + t) bytes per grid step


def _dice_kernel(x_ref, t_ref, dice_ref, inter_acc, xsum_acc, tsum_acc):
    """Grid = (n_blocks, hw_blocks); axis 1 is the HW reduction ('arbitrary')."""
    k = pl.program_id(1)

    @pl.when(k == 0)
    def _init():
        inter_acc[...] = jnp.zeros_like(inter_acc)
        xsum_acc[...] = jnp.zeros_like(xsum_acc)
        tsum_acc[...] = jnp.zeros_like(tsum_acc)

    x = x_ref[...].astype(jnp.float32)
    t = t_ref[...].astype(jnp.float32)

    inter_acc[...] += jnp.sum(x * t, axis=-1, keepdims=True)
    # Keep x_sum / t_sum separate so fp rounding matches the reference path.
    xsum_acc[...] += jnp.sum(x, axis=-1, keepdims=True)
    tsum_acc[...] += jnp.sum(t, axis=-1, keepdims=True)

    @pl.when(k == pl.num_programs(1) - 1)
    def _finalize():
        smooth = jnp.float32(1.0)
        dice = 2.0 * (inter_acc[...] + smooth) / (
            xsum_acc[...] + tsum_acc[...] + smooth
        )
        dice_ref[...] = dice


def _choose_blocks(N, HW, bytes_per_pair, step_target_bytes):
    """Pick (block_n, block_hw, lane_tiled).

    block_hw < HW only when HW % 128 == 0 (then it is a multiple of 128 that
    divides HW).  block_n is always either N or a multiple of 8.
    """
    elems_per_step = max(1, step_target_bytes // bytes_per_pair)
    lane_tiled = (HW % 128 == 0)
    min_rows = N if N < 8 else 8

    if lane_tiled and min_rows * HW > elems_per_step:
        # Even the minimum sublane-aligned row count busts the per-step
        # budget: tile the reduction (HW) axis instead.
        block_n = min_rows
        bhw = max(128, ((elems_per_step // block_n) // 128) * 128)
        bhw = min(bhw, HW)
        while bhw > 128 and HW % bhw != 0:   # 128 always divides HW here
            bhw -= 128
        return block_n, bhw, lane_tiled

    # Whole rows per step.
    block_hw = HW
    rows = max(1, elems_per_step // HW)
    if rows >= N:
        block_n = N
        # v7x megacore: keep >= 2 blocks on the parallel N axis whenever
        # block_n can stay a multiple of 8 (no effect on single-TC v5e/v6e).
        if N >= 16:
            block_n = max(8, ((N // 2) // 8) * 8)
    elif rows >= 8:
        block_n = min(N, (rows // 8) * 8)
    else:
        # HW is not a multiple of 128 and too large for the budget; we cannot
        # tile the lane axis cleanly, so take the smallest legal row block.
        # TODO(synk): masked partial-lane HW tiling to bound VMEM here too.
        block_n = min(N, 8)
    return block_n, block_hw, lane_tiled


def dice_loss(inp, target, *, step_target_bytes=_STEP_TARGET_BYTES):
    """inp: (N, C, H, W), target: (N, H, W) -> scalar float32 dice loss."""
    N, C, H, W = inp.shape
    assert target.shape == (N, H, W)
    assert C >= 2, "DiceLoss uses channel 1 of the input"
    HW = H * W

    x_item = jnp.dtype(inp.dtype).itemsize
    t_item = jnp.dtype(target.dtype).itemsize
    block_n, block_hw, lane_tiled = _choose_blocks(
        N, HW, x_item + t_item, step_target_bytes
    )

    num_n_blocks = pl.cdiv(N, block_n)
    num_hw_blocks = HW // block_hw  # block_hw divides HW by construction
    total_rows = num_n_blocks * block_n

    t2 = target.reshape(N, HW)

    if lane_tiled:
        # Free 2-D view: channel c occupies columns [c*HW, (c+1)*HW); channel 1
        # is selected purely via the block-column offset in the index_map.
        x2 = inp.reshape(N, C * HW)
        ch1_block_off = HW // block_hw
        x_spec = pl.BlockSpec(
            (block_n, block_hw), lambda i, k: (i, ch1_block_off + k)
        )
    else:
        # Odd spatial size: keep full HW in one block, select channel 1 via a
        # squeezed size-1 block along C (previously validated layout).
        x2 = inp.reshape(N, C, HW)
        x_spec = pl.BlockSpec(
            (block_n, pl.Squeezed(), HW), lambda i, k: (i, 1, 0)
        )

    t_spec = pl.BlockSpec((block_n, block_hw), lambda i, k: (i, k))
    out_spec = pl.BlockSpec((block_n, 1), lambda i, k: (i, 0))

    # Deterministic VMEM budget: double-buffered inputs + small headroom.
    step_bytes = block_n * block_hw * (x_item + t_item)
    vmem_limit_bytes = int(
        min(max(_VMEM_LIMIT_BYTES, 2 * step_bytes + (4 << 20)), 48 << 20)
    )

    cost = pl.CostEstimate(
        flops=3 * N * HW,
        transcendentals=0,
        bytes_accessed=N * HW * (x_item + t_item) + total_rows * 4,
    )

    dice = pl.pallas_call(
        _dice_kernel,
        out_shape=jax.ShapeDtypeStruct((total_rows, 1), jnp.float32),
        grid_spec=pltpu.PrefetchScalarGridSpec(
            num_scalar_prefetch=0,
            grid=(num_n_blocks, num_hw_blocks),
            in_specs=[x_spec, t_spec],
            out_specs=out_spec,
            scratch_shapes=[pltpu.VMEM((block_n, 1), jnp.float32)] * 3,
        ),
        compiler_params=pltpu.CompilerParams(
            dimension_semantics=("parallel", "arbitrary"),
            vmem_limit_bytes=vmem_limit_bytes,
        ),
        cost_estimate=cost,
    )(x2, t2)

    # Padded tail rows (when N % block_n != 0) may hold garbage/NaN dice
    # values; slice them off BEFORE the reduction (do not replace with mean).
    dice_flat = dice[:, 0][:N]
    return (1.0 - jnp.sum(dice_flat) / jnp.float32(N)).astype(jnp.float32)


def dice_loss_ref(inp, target):
    """Pure-JAX reference mirroring the PyTorch forward."""
    N = target.shape[0]
    smooth = 1.0
    input_flat = inp[:, 1, :, :].reshape(N, -1)
    target_flat = target.reshape(N, -1)
    intersection = input_flat * target_flat
    loss = 2.0 * (intersection.sum(1) + smooth) / (
        input_flat.sum(1) + target_flat.sum(1) + smooth
    )
    return 1.0 - loss.sum() / N


if __name__ == "__main__":
    key = jax.random.PRNGKey(0)
    k1, k2, k3, k4, k5, k6 = jax.random.split(key, 6)

    # Primary case (matches the module's typical small config).
    N, C, H, W = 2, 4, 16, 16
    x = jax.random.uniform(k1, (N, C, H, W), dtype=jnp.float32)
    t = (jax.random.uniform(k2, (N, H, W)) > 0.5).astype(jnp.float32)
    loss = dice_loss(x, t)
    jax.block_until_ready(loss)
    ref = dice_loss_ref(x, t)
    assert jnp.allclose(loss, ref, atol=1e-5, rtol=1e-5), (loss, ref)

    # Exercise the HW-tiled (reduction-axis accumulator) path with a tiny
    # per-step budget.
    N2, C2, H2, W2 = 4, 2, 32, 32
    x2 = jax.random.uniform(k3, (N2, C2, H2, W2), dtype=jnp.float32)
    t2 = (jax.random.uniform(k4, (N2, H2, W2)) > 0.5).astype(jnp.float32)
    loss2 = dice_loss(x2, t2, step_target_bytes=2048)
    jax.block_until_ready(loss2)
    ref2 = dice_loss_ref(x2, t2)
    assert jnp.allclose(loss2, ref2, atol=1e-5, rtol=1e-5), (loss2, ref2)

    # Exercise multi-block N with a padded tail block and non-128-multiple HW
    # (3-D squeezed-channel fallback path).
    N3, C3, H3, W3 = 20, 2, 10, 10
    x3 = jax.random.uniform(k5, (N3, C3, H3, W3), dtype=jnp.float32)
    t3 = (jax.random.uniform(k6, (N3, H3, W3)) > 0.5).astype(jnp.float32)
    loss3 = dice_loss(x3, t3, step_target_bytes=4096)
    jax.block_until_ready(loss3)
    ref3 = dice_loss_ref(x3, t3)
    assert jnp.allclose(loss3, ref3, atol=1e-5, rtol=1e-5), (loss3, ref3)

    print("KERNEL_OK")
</pallas_src>

<mosaic_0001>
module attributes {stable_mosaic.version = 11 : i64} {
  func.func @_dice_kernel(%arg0: i32, %arg1: i32, %arg2: memref<2x256xf32, #tpu.memory_space<vmem>>, %arg3: memref<2x256xf32, #tpu.memory_space<vmem>>, %arg4: memref<2x1xf32, #tpu.memory_space<vmem>>, %arg5: memref<2x1xf32, #tpu.memory_space<vmem>>, %arg6: memref<2x1xf32, #tpu.memory_space<vmem>>, %arg7: memref<2x1xf32, #tpu.memory_space<vmem>>) attributes {dimension_semantics = [#tpu.dimension_semantics<parallel>, #tpu.dimension_semantics<arbitrary>], iteration_bounds = array<i64: 1, 1>, scalar_prefetch = 0 : i64, scratch_operands = 3 : i64, tpu.core_type = #tpu.core_type<tc>, window_params = [{transform_indices = @transform_0, window_bounds = array<i64: 2, 256>}, {transform_indices = @transform_1, window_bounds = array<i64: 2, 256>}, {transform_indices = @transform_2, window_bounds = array<i64: 2, 1>}]} {
    %c0_i32 = arith.constant 0 : i32
    %0 = arith.cmpi eq, %arg1, %c0_i32 : i32
    %1 = arith.extui %0 : i1 to i32
    %c0_i32_0 = arith.constant 0 : i32
    %2 = arith.cmpi ne, %1, %c0_i32_0 : i32
    scf.if %2 {
      %cst_20 = arith.constant 0.000000e+00 : f32
      %24 = vector.broadcast %cst_20 : f32 to vector<2x1xf32>
      %c0_21 = arith.constant 0 : index
      %c0_22 = arith.constant 0 : index
      %25 = vector.load %arg5[%c0_21, %c0_22] : memref<2x1xf32, #tpu.memory_space<vmem>>, vector<2x1xf32>
      tpu.vector_store %arg5[%c0_21, %c0_22], %24 {strides = array<i32>} : memref<2x1xf32, #tpu.memory_space<vmem>>, vector<2x1xf32>,
      %cst_23 = arith.constant 0.000000e+00 : f32
      %26 = vector.broadcast %cst_23 : f32 to vector<2x1xf32>
      %c0_24 = arith.constant 0 : index
      %c0_25 = arith.constant 0 : index
      %27 = vector.load %arg6[%c0_24, %c0_25] : memref<2x1xf32, #tpu.memory_space<vmem>>, vector<2x1xf32>
      tpu.vector_store %arg6[%c0_24, %c0_25], %26 {strides = array<i32>} : memref<2x1xf32, #tpu.memory_space<vmem>>, vector<2x1xf32>,
      %cst_26 = arith.constant 0.000000e+00 : f32
      %28 = vector.broadcast %cst_26 : f32 to vector<2x1xf32>
      %c0_27 = arith.constant 0 : index
      %c0_28 = arith.constant 0 : index
      %29 = vector.load %arg7[%c0_27, %c0_28] : memref<2x1xf32, #tpu.memory_space<vmem>>, vector<2x1xf32>
      tpu.vector_store %arg7[%c0_27, %c0_28], %28 {strides = array<i32>} : memref<2x1xf32, #tpu.memory_space<vmem>>, vector<2x1xf32>,
    } else {
    }
    %c0 = arith.constant 0 : index
    %c0_1 = arith.constant 0 : index
    %3 = vector.load %arg2[%c0, %c0_1] : memref<2x256xf32, #tpu.memory_space<vmem>>, vector<2x256xf32>
    %c0_2 = arith.constant 0 : index
    %c0_3 = arith.constant 0 : index
    %4 = vector.load %arg3[%c0_2, %c0_3] : memref<2x256xf32, #tpu.memory_space<vmem>>, vector<2x256xf32>
    %c0_4 = arith.constant 0 : index
    %c0_5 = arith.constant 0 : index
    %5 = vector.load %arg5[%c0_4, %c0_5] : memref<2x1xf32, #tpu.memory_space<vmem>>, vector<2x1xf32>
    %6 = arith.mulf %3, %4 : vector<2x256xf32>
    %cst = arith.constant dense<0.000000e+00> : vector<2xf32>
    %7 = vector.multi_reduction <add>, %6, %cst [1] : vector<2x256xf32> to vector<2xf32>
    %8 = vector.shape_cast %7 : vector<2xf32> to vector<2x1xf32>
    %9 = arith.addf %5, %8 : vector<2x1xf32>
    %c0_6 = arith.constant 0 : index
    %c0_7 = arith.constant 0 : index
    %10 = vector.load %arg5[%c0_6, %c0_7] : memref<2x1xf32, #tpu.memory_space<vmem>>, vector<2x1xf32>
    tpu.vector_store %arg5[%c0_6, %c0_7], %9 {strides = array<i32>} : memref<2x1xf32, #tpu.memory_space<vmem>>, vector<2x1xf32>,
    %c0_8 = arith.constant 0 : index
    %c0_9 = arith.constant 0 : index
    %11 = vector.load %arg6[%c0_8, %c0_9] : memref<2x1xf32, #tpu.memory_space<vmem>>, vector<2x1xf32>
    %cst_10 = arith.constant dense<0.000000e+00> : vector<2xf32>
    %12 = vector.multi_reduction <add>, %3, %cst_10 [1] : vector<2x256xf32> to vector<2xf32>
    %13 = vector.shape_cast %12 : vector<2xf32> to vector<2x1xf32>
    %14 = arith.addf %11, %13 : vector<2x1xf32>
    %c0_11 = arith.constant 0 : index
    %c0_12 = arith.constant 0 : index
    %15 = vector.load %arg6[%c0_11, %c0_12] : memref<2x1xf32, #tpu.memory_space<vmem>>, vector<2x1xf32>
    tpu.vector_store %arg6[%c0_11, %c0_12], %14 {strides = array<i32>} : memref<2x1xf32, #tpu.memory_space<vmem>>, vector<2x1xf32>,
    %c0_13 = arith.constant 0 : index
    %c0_14 = arith.constant 0 : index
    %16 = vector.load %arg7[%c0_13, %c0_14] : memref<2x1xf32, #tpu.memory_space<vmem>>, vector<2x1xf32>
    %cst_15 = arith.constant dense<0.000000e+00> : vector<2xf32>
    %17 = vector.multi_reduction <add>, %4, %cst_15 [1] : vector<2x256xf32> to vector<2xf32>
    %18 = vector.shape_cast %17 : vector<2xf32> to vector<2x1xf32>
    %19 = arith.addf %16, %18 : vector<2x1xf32>
    %c0_16 = arith.constant 0 : index
    %c0_17 = arith.constant 0 : index
    %20 = vector.load %arg7[%c0_16, %c0_17] : memref<2x1xf32, #tpu.memory_space<vmem>>, vector<2x1xf32>
    tpu.vector_store %arg7[%c0_16, %c0_17], %19 {strides = array<i32>} : memref<2x1xf32, #tpu.memory_space<vmem>>, vector<2x1xf32>,
    %c0_i32_18 = arith.constant 0 : i32
    %21 = arith.cmpi eq, %arg1, %c0_i32_18 : i32
    %22 = arith.extui %21 : i1 to i32
    %c0_i32_19 = arith.constant 0 : i32
    %23 = arith.cmpi ne, %22, %c0_i32_19 : i32
    scf.if %23 {
      %c0_20 = arith.constant 0 : index
      %c0_21 = arith.constant 0 : index
      %24 = vector.load %arg5[%c0_20, %c0_21] : memref<2x1xf32, #tpu.memory_space<vmem>>, vector<2x1xf32>
      %cst_22 = arith.constant 1.000000e+00 : f32
      %25 = vector.broadcast %cst_22 : f32 to vector<2x1xf32>
      %26 = arith.addf %24, %25 : vector<2x1xf32>
      %cst_23 = arith.constant 2.000000e+00 : f32
      %27 = vector.broadcast %cst_23 : f32 to vector<2x1xf32>
      %28 = arith.mulf %27, %26 : vector<2x1xf32>
      %c0_24 = arith.constant 0 : index
      %c0_25 = arith.constant 0 : index
      %29 = vector.load %arg6[%c0_24, %c0_25] : memref<2x1xf32, #tpu.memory_space<vmem>>, vector<2x1xf32>
      %c0_26 = arith.constant 0 : index
      %c0_27 = arith.constant 0 : index
      %30 = vector.load %arg7[%c0_26, %c0_27] : memref<2x1xf32, #tpu.memory_space<vmem>>, vector<2x1xf32>
      %31 = arith.addf %29, %30 : vector<2x1xf32>
      %cst_28 = arith.constant 1.000000e+00 : f32
      %32 = vector.broadcast %cst_28 : f32 to vector<2x1xf32>
      %33 = arith.addf %31, %32 : vector<2x1xf32>
      %34 = arith.divf %28, %33 : vector<2x1xf32>
      %c0_29 = arith.constant 0 : index
      %c0_30 = arith.constant 0 : index
      %35 = vector.load %arg4[%c0_29, %c0_30] : memref<2x1xf32, #tpu.memory_space<vmem>>, vector<2x1xf32>
      tpu.vector_store %arg4[%c0_29, %c0_30], %34 {strides = array<i32>} : memref<2x1xf32, #tpu.memory_space<vmem>>, vector<2x1xf32>,
    } else {
    }
    return
  }
  func.func @transform_0(%arg0: i32, %arg1: i32) -> (i32, i32) {
    %c1_i32 = arith.constant 1 : i32
    %0 = arith.addi %c1_i32, %arg1 : i32
    %c0_i32 = arith.constant 0 : i32
    return %arg0, %0 : i32, i32
  }
  func.func @transform_1(%arg0: i32, %arg1: i32) -> (i32, i32) {
    %c0_i32 = arith.constant 0 : i32
    return %arg0, %arg1 : i32, i32
  }
  func.func @transform_2(%arg0: i32, %arg1: i32) -> (i32, i32) {
    %c0_i32 = arith.constant 0 : i32
    %c0_i32_0 = arith.constant 0 : i32
    return %arg0, %c0_i32 : i32, i32
  }
}

</mosaic_0001>

<llo_original>
// kernel: tpu_custom_call.1
$region0: #{tpu_custom_call.1}
  #allocation0 [shape = 'u32[]', space=smem, size = 0x4, offset = 0x4, fixed_abs, tag = 'smem constant byte address 0x4 - core index']
  #allocation1 [shape = 'u32[144,128]{1,0:T(1,128)}', space=vmem, size = 0x12000, scoped, tag = 'internal scratch']
  #allocation2 [shape = 'f32[2,1]{1,0:T(2,128)}', space=vmem, size = 0x400, scoped, tag = 'scratch operand']
  #allocation3 [shape = 'f32[2,1]{1,0:T(2,128)}', space=vmem, size = 0x400, scoped, tag = 'scratch operand']
  #allocation4 [shape = 'f32[2,1]{1,0:T(2,128)}', space=vmem, size = 0x400, scoped, tag = 'scratch operand']
  %s0 = inlined_call_operand.hbm [shape: f32[2,1024], index: 0, kind: input, shape index: {}]
  %s1 = inlined_call_operand.hbm [shape: f32[2,256], index: 1, kind: input, shape index: {}]
  %s2 = inlined_call_operand.vmem [shape: f32[2,1], index: 2, kind: output, shape index: {}]
  %s3 = sld [smem:[#allocation0]]
  $region34: #{tpu_custom_call.1} parent=0
    _
  %s5 = ssub.s32 1, %s3
  %s6 = scalar_select 0, %s5, %s3
  $region1: #{tpu_custom_call.1} parent=0
    #allocation5 [shape = 'u8[2048]{0}', space=vmem, size = 0x800, scoped, tag = 'input window, operand 0, single buffered']
    #allocation6 [shape = 's32[1]{0}', space=sflag, size = 0x4, scoped, tag = 'scoped memory for tpu_custom_call.1']
    #allocation7 [shape = 'u8[2048]{0}', space=vmem, size = 0x800, scoped, tag = 'input window, operand 1, single buffered']
    #allocation8 [shape = 's32[1]{0}', space=sflag, size = 0x4, scoped, tag = 'scoped memory for tpu_custom_call.1']
    %7 = vsyncpa [#allocation6], 0
    %8 = vsyncpa [#allocation8], 0
    // Predicated region
    $region2: #{tpu_custom_call.1} parent=1 // pred_check
      _
    $region3: #{tpu_custom_call.1} parent=1 // pred_check_branch
      %10 = sbr.rel (0) target = $region5
    $region4: #{tpu_custom_call.1} parent=1 // pred_region
      %s11 = sadd.s32 0, 1
      %s12 = smul.u32 2, %s11
      %s14 = ssub.s32 64, 64
      %15 = vsyncadd [#allocation6], %s14
      %s16 = smul.addr %s12, 32
      %s17 = scalar_lea.hbm %s0, %s16
      %s19 = sshll.u32 [#allocation5], 4
      %s20 = int_to_ptr.vmem [resolvable:$true] %s19
      %22 = dma.hbm_to_vmem [thread:$0]  %s17, 64, %s20, [#allocation6]
    $region5: #{tpu_custom_call.1} parent=1 // pred_fallthru
      _
    // Predicated region
    $region6: #{tpu_custom_call.1} parent=1 // pred_check
      _
    $region7: #{tpu_custom_call.1} parent=1 // pred_check_branch
      %24 = sbr.rel (0) target = $region9
    $region8: #{tpu_custom_call.1} parent=1 // pred_region
      %s26 = ssub.s32 64, 64
      %27 = vsyncadd [#allocation8], %s26
      %s29 = sshll.u32 [#allocation7], 4
      %s30 = int_to_ptr.vmem [resolvable:$true] %s29
      %32 = dma.hbm_to_vmem [thread:$0]  %s1, 64, %s30, [#allocation8]
    $region9: #{tpu_custom_call.1} parent=1 // pred_fallthru
      _
    // Predicated region
    $region10: #{tpu_custom_call.1} parent=1 // pred_check
      _
    $region11: #{tpu_custom_call.1} parent=1 // pred_check_branch
      %34 = sbr.rel (0) target = $region13
    $region12: #{tpu_custom_call.1} parent=1 // pred_region
      %35 = dma.done [#allocation6], 64
    $region13: #{tpu_custom_call.1} parent=1 // pred_fallthru
      _
    // Predicated region
    $region14: #{tpu_custom_call.1} parent=1 // pred_check
      _
    $region15: #{tpu_custom_call.1} parent=1 // pred_check_branch
      %37 = sbr.rel (0) target = $region17
    $region16: #{tpu_custom_call.1} parent=1 // pred_region
      %38 = dma.done [#allocation8], 64
    $region17: #{tpu_custom_call.1} parent=1 // pred_fallthru
      _
    %s39 = sadd.s32 0, 1
    %s40 = smul.u32 2, %s39
    %p41 = scmp.eq.s32.totalorder 0, 0
    // Predicated region
    $region18: #{tpu_custom_call.1} parent=1 // pred_check
      %p42 = pneg %p41
    $region19: #{tpu_custom_call.1} parent=1 // pred_check_branch
      %44 = sbr.rel (%p42) target = $region21
    $region20: #{tpu_custom_call.1} parent=1 // pred_region
      %vm45 = vcmask 1024
      %46 = vst.msk [vmem:[#allocation2] sm:$0x3] %vm45, 0.0
      %47 = vst.msk [vmem:[#allocation3] sm:$0x3] %vm45, 0.0
      %48 = vst.msk [vmem:[#allocation4] sm:$0x3] %vm45, 0.0
    $region21: #{tpu_custom_call.1} parent=1 // pred_fallthru
      _
    %v49 = vld [vmem:[#allocation5] sm:$0xf]
    %v50 = vld [vmem:[#allocation7] sm:$0xf]
    %v51 = vld [vmem:[#allocation2] sm:$0x3]
    %v52 = vmul.f32 %v49, %v50
    %v55 = vunpack.c.l.s4 1983009808
    %v56 = vunpack.c.0.s8 %v55
    %v57 = vlaneseq
    %v58 = vshrl.u32 %v57, 7
    %v59 = vsub.s32 %v56, %v58
    %v60 = vrot.slane %v52, %v59
    %v61 = vcombine.high %v60, %v60
    %vm64 = vcmask 1041408
    %v65 = vsel %vm64, %v60, 0.0
    %v66 = vsel %vm64, %v61, 0.0
    %v67 = vadd.f32 %v65, %v66
    %68 = vadd.xlane.f32.xlu0 %v67
    %v69 = vpop.xlane.xlu0 %68
    %v70 = vadd.f32 %v51, %v69
    %vm71 = vcmask 1024
    %72 = vst.msk [vmem:[#allocation2] sm:$0x3] %vm71, %v70
    %v73 = vld [vmem:[#allocation3] sm:$0x3]
    %v76 = vunpack.c.l.s4 1983009808
    %v77 = vunpack.c.0.s8 %v76
    %v78 = vlaneseq
    %v79 = vshrl.u32 %v78, 7
    %v80 = vsub.s32 %v77, %v79
    %v81 = vrot.slane %v49, %v80
    %v82 = vcombine.high %v81, %v81
    %v85 = vsel %vm64, %v81, 0.0
    %v86 = vsel %vm64, %v82, 0.0
    %v87 = vadd.f32 %v85, %v86
    %88 = vadd.xlane.f32.xlu0 %v87
    %v89 = vpop.xlane.xlu0 %88
    %v90 = vadd.f32 %v73, %v89
    %91 = vst.msk [vmem:[#allocation3] sm:$0x3] %vm71, %v90
    %v92 = vld [vmem:[#allocation4] sm:$0x3]
    %v95 = vunpack.c.l.s4 1983009808
    %v96 = vunpack.c.0.s8 %v95
    %v97 = vlaneseq
    %v98 = vshrl.u32 %v97, 7
    %v99 = vsub.s32 %v96, %v98
    %v100 = vrot.slane %v50, %v99
    %v101 = vcombine.high %v100, %v100
    %v104 = vsel %vm64, %v100, 0.0
    %v105 = vsel %vm64, %v101, 0.0
    %v106 = vadd.f32 %v104, %v105
    %107 = vadd.xlane.f32.xlu0 %v106
    %v108 = vpop.xlane.xlu0 %107
    %v109 = vadd.f32 %v92, %v108
    %110 = vst.msk [vmem:[#allocation4] sm:$0x3] %vm71, %v109
    // Predicated region
    $region22: #{tpu_custom_call.1} parent=1 // pred_check
      %p111 = pneg %p41
    $region23: #{tpu_custom_call.1} parent=1 // pred_check_branch
      %113 = sbr.rel (%p111) target = $region25
    $region24: #{tpu_custom_call.1} parent=1 // pred_region
      %v114 = vld [vmem:[#allocation2] sm:$0x3]
      %v115 = vadd.f32 %v114, 1.0
      %v116 = vmul.f32 %v115, 2.0
      %v117 = vld [vmem:[#allocation3] sm:$0x3]
      %v118 = vld [vmem:[#allocation4] sm:$0x3]
      %v119 = vadd.f32 %v117, %v118
      %v120 = vadd.f32 %v119, 1.0
      %v121 = vrcp.pop %v120
      %v122 = vmul.f32 %v116, %v121
      %123 = vst.msk [vmem:[%s2] sm:$0x3] %vm71, %v122
    $region25: #{tpu_custom_call.1} parent=1 // pred_fallthru
      _
    // Predicated region
    $region26: #{tpu_custom_call.1} parent=1 // pred_check
      _
    $region27: #{tpu_custom_call.1} parent=1 // pred_check_branch
      %125 = sbr.rel (0) target = $region29
    $region28: #{tpu_custom_call.1} parent=1 // pred_region
      _
    $region29: #{tpu_custom_call.1} parent=1 // pred_fallthru
      _
    // Predicated region
    $region30: #{tpu_custom_call.1} parent=1 // pred_check
      _
    $region31: #{tpu_custom_call.1} parent=1 // pred_check_branch
      %127 = sbr.rel (0) target = $region33
    $region32: #{tpu_custom_call.1} parent=1 // pred_region
      _
    $region33: #{tpu_custom_call.1} parent=1 // pred_fallthru
      _
    %128 = vsyncpa [#allocation6], 1
    %129 = vsyncpa [#allocation8], 1

</llo_original>
